<compile_context>
chip_gen: v7x
topology: tpu7x:2x2x1
jax: 0.10.0
libtpu: 0.0.40
codegen_flags: <defaults>
</compile_context>

<pallas_src>
import jax
import jax.numpy as jnp
from jax import lax
from jax.experimental import pallas as pl
from jax.experimental.pallas import tpu as pltpu


def lstm_kernel(x_ref, wih_ref, whh_ref, slab_ref, out_ref, h_all_scr):
    """Full LSTM recurrence over T steps + linear head, one grid point.

    x_ref    : (T, I)   f32   input sequence
    wih_ref  : (I, 4H)  f32   input->gates weights (transposed, g cols x2)
    whh_ref  : (H, 4H)  bf16  hidden->gates weights (transposed, g cols x2)
    slab_ref : (8, 4H)  f32   packed small params:
                              row 0        = b_ih + b_hh      (g cols x2)
                              row 1[:H]    = h0
                              row 2[:H]    = c0
                              row 3[:H]    = linear weight (row)
                              row 4[0]     = linear bias
    out_ref  : (T, 1)   f32   output values
    h_all_scr: (T, H)   f32   VMEM scratch: all hidden states (for the head)
    """
    T = x_ref.shape[0]
    H = h_all_scr.shape[1]

    # ---- Unpack the parameter slab (one vreg, static slices). ----
    slab = slab_ref[...]                      # (8, 4H)
    b = slab[0:1, :]                          # (1, 4H)
    h = slab[1:2, 0:H]                        # (1, H)
    c = slab[2:3, 0:H]                        # (1, H)
    w_lin = slab[3:4, 0:H]                    # (1, H)
    b_lin = slab[4:5, 0:1]                    # (1, 1)

    # ---- Prologue: batched input projection for ALL T steps (off the serial
    # chain), kept as a value: (T, 4H) = (8, 128) f32 is exactly one vreg. ----
    gx = jnp.dot(x_ref[...], wih_ref[...],
                 preferred_element_type=jnp.float32) + b       # (T, 4H)

    whh = whh_ref[...]                        # (H, 4H) bf16, hoisted

    # ---- Recurrence: fully unrolled static Python loop (T is tiny) so all
    # slices below are static and the scheduler sees straight-line code. ----
    for t in range(T):
        # Only the hidden->gates bf16 matmul remains on the per-step chain.
        gates = gx[t:t + 1, :] + jnp.dot(
            h.astype(jnp.bfloat16), whh,
            preferred_element_type=jnp.float32)                # (1, 4H) f32

        # Single full-width sigmoid; g recovered via tanh(x) = 2*sigmoid(2x)-1
        # (the 2x was folded into the g-gate columns during param prep).
        sg = jax.nn.sigmoid(gates)
        # PyTorch gate order: input, forget, cell (g), output.
        i_g = sg[:, 0 * H:1 * H]
        f_g = sg[:, 1 * H:2 * H]
        g_g = 2.0 * sg[:, 2 * H:3 * H] - 1.0
        o_g = sg[:, 3 * H:4 * H]

        c = f_g * c + i_g * g_g
        h = o_g * jnp.tanh(c)

        # Off the serial chain: nothing in the loop reads h_all_scr.
        h_all_scr[t:t + 1, :] = h

    # ---- Epilogue: linear head as mul + lane reduce, exactly one store. ----
    out_ref[...] = (
        jnp.sum(h_all_scr[...] * w_lin, axis=-1, keepdims=True) + b_lin
    )


def prepare_params(w_ih, w_hh, b_ih, b_hh, h0, c0, w_lin, b_lin):
    """One-time parameter prep (do NOT run per call).

    PyTorch conventions in:
      w_ih (4H, I), w_hh (4H, H), b_ih/b_hh (4H,), h0/c0 (H,),
      w_lin (1, H), b_lin (1,)
    Returns (wih_t, whh_bf16, slab) ready for lstm_forward.
    """
    H = h0.shape[-1]
    G4 = 4 * H

    w_ih = jnp.asarray(w_ih, jnp.float32)
    w_hh = jnp.asarray(w_hh, jnp.float32)
    b = jnp.asarray(b_ih, jnp.float32) + jnp.asarray(b_hh, jnp.float32)

    # Fold the 2x of tanh(x) = 2*sigmoid(2x) - 1 into the g-gate rows.
    scale = jnp.ones((G4,), jnp.float32).at[2 * H:3 * H].set(2.0)
    wih_t = (w_ih * scale[:, None]).T                       # (I, 4H) f32
    whh_bf16 = ((w_hh * scale[:, None]).T).astype(jnp.bfloat16)  # (H, 4H) bf16
    b = b * scale                                           # (4H,)

    slab = jnp.zeros((8, G4), jnp.float32)
    slab = slab.at[0, :].set(b)
    slab = slab.at[1, 0:H].set(jnp.asarray(h0, jnp.float32).reshape(H))
    slab = slab.at[2, 0:H].set(jnp.asarray(c0, jnp.float32).reshape(H))
    slab = slab.at[3, 0:H].set(jnp.asarray(w_lin, jnp.float32).reshape(H))
    slab = slab.at[4, 0].set(jnp.asarray(b_lin, jnp.float32).reshape(()))
    return wih_t, whh_bf16, slab


@jax.jit
def lstm_forward(x, wih_t, whh_bf16, slab):
    """Pallas-backed equivalent of LSTM.forward(obs) given prepared params."""
    T, _ = x.shape
    H = whh_bf16.shape[0]
    vmem = pl.BlockSpec(memory_space=pltpu.MemorySpace.VMEM)
    return pl.pallas_call(
        lstm_kernel,
        out_shape=jax.ShapeDtypeStruct((T, 1), jnp.float32),
        in_specs=[vmem, vmem, vmem, vmem],
        out_specs=vmem,
        scratch_shapes=[
            pltpu.VMEM((T, H), jnp.float32),   # all hidden states (head input)
        ],
    )(x, wih_t, whh_bf16, slab)


def lstm_reference(x, w_ih, w_hh, b_ih, b_hh, h0, c0, w_lin, b_lin):
    """Pure-JAX f32 reference (lax.scan) for correctness checking."""
    H = h0.shape[-1]
    b = b_ih + b_hh

    def cell(carry, x_t):
        h, c = carry
        gates = x_t @ w_ih.T + h @ w_hh.T + b
        i_g = jax.nn.sigmoid(gates[0 * H:1 * H])
        f_g = jax.nn.sigmoid(gates[1 * H:2 * H])
        g_g = jnp.tanh(gates[2 * H:3 * H])
        o_g = jax.nn.sigmoid(gates[3 * H:4 * H])
        c_new = f_g * c + i_g * g_g
        h_new = o_g * jnp.tanh(c_new)
        return (h_new, c_new), h_new

    _, hs = lax.scan(cell, (h0, c0), x)
    return hs @ w_lin.T + b_lin


if __name__ == "__main__":
    # cfg: NUM_CS=4, NUM_US=4, NUM_DIST=8  -> input_size I = 16
    #      HIDDEN_L_SIZE = 32              -> H = 32 (4H = 128 lanes)
    T, I, H = 8, 16, 32

    key = jax.random.PRNGKey(0)
    ks = jax.random.split(key, 9)

    # Deterministic "synthetic checkpoint" parameters (PyTorch shape conventions).
    w_ih = jax.random.normal(ks[0], (4 * H, I), jnp.float32) * 0.1
    w_hh = jax.random.normal(ks[1], (4 * H, H), jnp.float32) * 0.1
    b_ih = jax.random.normal(ks[2], (4 * H,), jnp.float32) * 0.1
    b_hh = jax.random.normal(ks[3], (4 * H,), jnp.float32) * 0.1
    w_lin = jax.random.normal(ks[4], (1, H), jnp.float32) * 0.1
    b_lin = jax.random.normal(ks[5], (1,), jnp.float32) * 0.1
    h0 = jax.random.normal(ks[6], (H,), jnp.float32)       # self.hidden_0[0]
    c0 = jax.random.normal(ks[7], (H,), jnp.float32)       # self.hidden_0[1]

    # obs: (T, I)  (PyTorch's obs.view(T, 1, -1) with batch=1 folded out)
    x = jax.random.normal(ks[8], (T, I), jnp.float32)

    # One-time prep (transposes, bias fold, g-gate 2x scale, bf16 cast, packing).
    wih_t, whh_bf16, slab = prepare_params(
        w_ih, w_hh, b_ih, b_hh, h0, c0, w_lin, b_lin)
    wih_t, whh_bf16, slab = jax.block_until_ready((wih_t, whh_bf16, slab))

    values = lstm_forward(x, wih_t, whh_bf16, slab)
    values = jax.block_until_ready(values)

    ref = lstm_reference(x, w_ih, w_hh, b_ih, b_hh, h0, c0, w_lin, b_lin)
    assert values.shape == (T, 1), values.shape
    # Slightly loosened tolerance: recurrent matmul runs in bf16 (accumulated
    # in f32); error over the T=8 recurrence stays well inside this bound.
    err = jnp.max(jnp.abs(values - ref))
    assert jnp.allclose(values, ref, atol=2e-2, rtol=2e-2), (
        "mismatch vs reference", float(err), values, ref)

    print("KERNEL_OK")
</pallas_src>

<mosaic_0001>
module attributes {stable_mosaic.version = 11 : i64} {
  func.func @lstm_kernel(%arg0: memref<8x16xf32, #tpu.memory_space<vmem>>, %arg1: memref<16x128xf32, #tpu.memory_space<vmem>>, %arg2: memref<32x128xbf16, #tpu.memory_space<vmem>>, %arg3: memref<8x128xf32, #tpu.memory_space<vmem>>, %arg4: memref<8x1xf32, #tpu.memory_space<vmem>>, %arg5: memref<8x32xf32, #tpu.memory_space<vmem>>) attributes {dimension_semantics = [], scalar_prefetch = 0 : i64, scratch_operands = 1 : i64, tpu.core_type = #tpu.core_type<tc>} {
    %c0 = arith.constant 0 : index
    %c0_0 = arith.constant 0 : index
    %0 = vector.load %arg3[%c0, %c0_0] : memref<8x128xf32, #tpu.memory_space<vmem>>, vector<8x128xf32>
    %1 = vector.extract_strided_slice %0 {offsets = [0, 0], sizes = [1, 128], strides = [1, 1]} : vector<8x128xf32> to vector<1x128xf32>
    %2 = vector.extract_strided_slice %0 {offsets = [1, 0], sizes = [1, 32], strides = [1, 1]} : vector<8x128xf32> to vector<1x32xf32>
    %3 = vector.extract_strided_slice %0 {offsets = [2, 0], sizes = [1, 32], strides = [1, 1]} : vector<8x128xf32> to vector<1x32xf32>
    %4 = vector.extract_strided_slice %0 {offsets = [3, 0], sizes = [1, 32], strides = [1, 1]} : vector<8x128xf32> to vector<1x32xf32>
    %5 = vector.extract_strided_slice %0 {offsets = [4, 0], sizes = [1, 1], strides = [1, 1]} : vector<8x128xf32> to vector<1x1xf32>
    %c0_1 = arith.constant 0 : index
    %c0_2 = arith.constant 0 : index
    %6 = vector.load %arg0[%c0_1, %c0_2] : memref<8x16xf32, #tpu.memory_space<vmem>>, vector<8x16xf32>
    %c0_3 = arith.constant 0 : index
    %c0_4 = arith.constant 0 : index
    %7 = vector.load %arg1[%c0_3, %c0_4] : memref<16x128xf32, #tpu.memory_space<vmem>>, vector<16x128xf32>
    %cst = arith.constant dense<0.000000e+00> : vector<8x128xf32>
    %8 = tpu.matmul %6, %7, %cst {dimension_numbers = #tpu.dot_dimension_numbers<[1], [0], [0], [1], [0, 0, 1, 1], [], []>} : vector<8x16xf32>, vector<16x128xf32>, vector<8x128xf32> -> vector<8x128xf32>
    %9 = vector.broadcast %1 : vector<1x128xf32> to vector<8x128xf32>
    %10 = arith.addf %8, %9 : vector<8x128xf32>
    %c0_5 = arith.constant 0 : index
    %c0_6 = arith.constant 0 : index
    %11 = vector.load %arg2[%c0_5, %c0_6] : memref<32x128xbf16, #tpu.memory_space<vmem>>, vector<32x128xbf16>
    %12 = vector.extract_strided_slice %10 {offsets = [0, 0], sizes = [1, 128], strides = [1, 1]} : vector<8x128xf32> to vector<1x128xf32>
    %13 = arith.truncf %2 : vector<1x32xf32> to vector<1x32xbf16>
    %cst_7 = arith.constant dense<0.000000e+00> : vector<1x128xf32>
    %14 = tpu.matmul %13, %11, %cst_7 {dimension_numbers = #tpu.dot_dimension_numbers<[1], [0], [0], [1], [0, 0, 1, 1], [], []>} : vector<1x32xbf16>, vector<32x128xbf16>, vector<1x128xf32> -> vector<1x128xf32>
    %15 = arith.addf %12, %14 : vector<1x128xf32>
    %16 = arith.negf %15 : vector<1x128xf32>
    %17 = math.exp %16 : vector<1x128xf32>
    %cst_8 = arith.constant 1.000000e+00 : f32
    %18 = vector.broadcast %cst_8 : f32 to vector<1x128xf32>
    %19 = arith.addf %18, %17 : vector<1x128xf32>
    %20 = arith.divf %18, %19 : vector<1x128xf32>
    %21 = vector.extract_strided_slice %20 {offsets = [0, 0], sizes = [1, 32], strides = [1, 1]} : vector<1x128xf32> to vector<1x32xf32>
    %22 = vector.extract_strided_slice %20 {offsets = [0, 32], sizes = [1, 32], strides = [1, 1]} : vector<1x128xf32> to vector<1x32xf32>
    %23 = vector.extract_strided_slice %20 {offsets = [0, 64], sizes = [1, 32], strides = [1, 1]} : vector<1x128xf32> to vector<1x32xf32>
    %cst_9 = arith.constant 2.000000e+00 : f32
    %24 = vector.broadcast %cst_9 : f32 to vector<1x32xf32>
    %25 = arith.mulf %24, %23 : vector<1x32xf32>
    %cst_10 = arith.constant 1.000000e+00 : f32
    %26 = vector.broadcast %cst_10 : f32 to vector<1x32xf32>
    %27 = arith.subf %25, %26 : vector<1x32xf32>
    %28 = vector.extract_strided_slice %20 {offsets = [0, 96], sizes = [1, 32], strides = [1, 1]} : vector<1x128xf32> to vector<1x32xf32>
    %29 = arith.mulf %22, %3 : vector<1x32xf32>
    %30 = arith.mulf %21, %27 : vector<1x32xf32>
    %31 = arith.addf %29, %30 : vector<1x32xf32>
    %32 = math.tanh %31 : vector<1x32xf32>
    %33 = arith.mulf %28, %32 : vector<1x32xf32>
    %c0_11 = arith.constant 0 : index
    %c0_12 = arith.constant 0 : index
    %34 = vector.load %arg5[%c0_11, %c0_12] : memref<8x32xf32, #tpu.memory_space<vmem>>, vector<1x32xf32>
    tpu.vector_store %arg5[%c0_11, %c0_12], %33 {strides = array<i32>} : memref<8x32xf32, #tpu.memory_space<vmem>>, vector<1x32xf32>,
    %35 = vector.extract_strided_slice %10 {offsets = [1, 0], sizes = [1, 128], strides = [1, 1]} : vector<8x128xf32> to vector<1x128xf32>
    %36 = arith.truncf %33 : vector<1x32xf32> to vector<1x32xbf16>
    %cst_13 = arith.constant dense<0.000000e+00> : vector<1x128xf32>
    %37 = tpu.matmul %36, %11, %cst_13 {dimension_numbers = #tpu.dot_dimension_numbers<[1], [0], [0], [1], [0, 0, 1, 1], [], []>} : vector<1x32xbf16>, vector<32x128xbf16>, vector<1x128xf32> -> vector<1x128xf32>
    %38 = arith.addf %35, %37 : vector<1x128xf32>
    %39 = arith.negf %38 : vector<1x128xf32>
    %40 = math.exp %39 : vector<1x128xf32>
    %cst_14 = arith.constant 1.000000e+00 : f32
    %41 = vector.broadcast %cst_14 : f32 to vector<1x128xf32>
    %42 = arith.addf %41, %40 : vector<1x128xf32>
    %43 = arith.divf %41, %42 : vector<1x128xf32>
    %44 = vector.extract_strided_slice %43 {offsets = [0, 0], sizes = [1, 32], strides = [1, 1]} : vector<1x128xf32> to vector<1x32xf32>
    %45 = vector.extract_strided_slice %43 {offsets = [0, 32], sizes = [1, 32], strides = [1, 1]} : vector<1x128xf32> to vector<1x32xf32>
    %46 = vector.extract_strided_slice %43 {offsets = [0, 64], sizes = [1, 32], strides = [1, 1]} : vector<1x128xf32> to vector<1x32xf32>
    %cst_15 = arith.constant 2.000000e+00 : f32
    %47 = vector.broadcast %cst_15 : f32 to vector<1x32xf32>
    %48 = arith.mulf %47, %46 : vector<1x32xf32>
    %cst_16 = arith.constant 1.000000e+00 : f32
    %49 = vector.broadcast %cst_16 : f32 to vector<1x32xf32>
    %50 = arith.subf %48, %49 : vector<1x32xf32>
    %51 = vector.extract_strided_slice %43 {offsets = [0, 96], sizes = [1, 32], strides = [1, 1]} : vector<1x128xf32> to vector<1x32xf32>
    %52 = arith.mulf %45, %31 : vector<1x32xf32>
    %53 = arith.mulf %44, %50 : vector<1x32xf32>
    %54 = arith.addf %52, %53 : vector<1x32xf32>
    %55 = math.tanh %54 : vector<1x32xf32>
    %56 = arith.mulf %51, %55 : vector<1x32xf32>
    %c1 = arith.constant 1 : index
    %c0_17 = arith.constant 0 : index
    %57 = vector.load %arg5[%c1, %c0_17] : memref<8x32xf32, #tpu.memory_space<vmem>>, vector<1x32xf32>
    tpu.vector_store %arg5[%c1, %c0_17], %56 {strides = array<i32>} : memref<8x32xf32, #tpu.memory_space<vmem>>, vector<1x32xf32>,
    %58 = vector.extract_strided_slice %10 {offsets = [2, 0], sizes = [1, 128], strides = [1, 1]} : vector<8x128xf32> to vector<1x128xf32>
    %59 = arith.truncf %56 : vector<1x32xf32> to vector<1x32xbf16>
    %cst_18 = arith.constant dense<0.000000e+00> : vector<1x128xf32>
    %60 = tpu.matmul %59, %11, %cst_18 {dimension_numbers = #tpu.dot_dimension_numbers<[1], [0], [0], [1], [0, 0, 1, 1], [], []>} : vector<1x32xbf16>, vector<32x128xbf16>, vector<1x128xf32> -> vector<1x128xf32>
    %61 = arith.addf %58, %60 : vector<1x128xf32>
    %62 = arith.negf %61 : vector<1x128xf32>
    %63 = math.exp %62 : vector<1x128xf32>
    %cst_19 = arith.constant 1.000000e+00 : f32
    %64 = vector.broadcast %cst_19 : f32 to vector<1x128xf32>
    %65 = arith.addf %64, %63 : vector<1x128xf32>
    %66 = arith.divf %64, %65 : vector<1x128xf32>
    %67 = vector.extract_strided_slice %66 {offsets = [0, 0], sizes = [1, 32], strides = [1, 1]} : vector<1x128xf32> to vector<1x32xf32>
    %68 = vector.extract_strided_slice %66 {offsets = [0, 32], sizes = [1, 32], strides = [1, 1]} : vector<1x128xf32> to vector<1x32xf32>
    %69 = vector.extract_strided_slice %66 {offsets = [0, 64], sizes = [1, 32], strides = [1, 1]} : vector<1x128xf32> to vector<1x32xf32>
    %cst_20 = arith.constant 2.000000e+00 : f32
    %70 = vector.broadcast %cst_20 : f32 to vector<1x32xf32>
    %71 = arith.mulf %70, %69 : vector<1x32xf32>
    %cst_21 = arith.constant 1.000000e+00 : f32
    %72 = vector.broadcast %cst_21 : f32 to vector<1x32xf32>
    %73 = arith.subf %71, %72 : vector<1x32xf32>
    %74 = vector.extract_strided_slice %66 {offsets = [0, 96], sizes = [1, 32], strides = [1, 1]} : vector<1x128xf32> to vector<1x32xf32>
    %75 = arith.mulf %68, %54 : vector<1x32xf32>
    %76 = arith.mulf %67, %73 : vector<1x32xf32>
    %77 = arith.addf %75, %76 : vector<1x32xf32>
    %78 = math.tanh %77 : vector<1x32xf32>
    %79 = arith.mulf %74, %78 : vector<1x32xf32>
    %c2 = arith.constant 2 : index
    %c0_22 = arith.constant 0 : index
    %80 = vector.load %arg5[%c2, %c0_22] : memref<8x32xf32, #tpu.memory_space<vmem>>, vector<1x32xf32>
    tpu.vector_store %arg5[%c2, %c0_22], %79 {strides = array<i32>} : memref<8x32xf32, #tpu.memory_space<vmem>>, vector<1x32xf32>,
    %81 = vector.extract_strided_slice %10 {offsets = [3, 0], sizes = [1, 128], strides = [1, 1]} : vector<8x128xf32> to vector<1x128xf32>
    %82 = arith.truncf %79 : vector<1x32xf32> to vector<1x32xbf16>
    %cst_23 = arith.constant dense<0.000000e+00> : vector<1x128xf32>
    %83 = tpu.matmul %82, %11, %cst_23 {dimension_numbers = #tpu.dot_dimension_numbers<[1], [0], [0], [1], [0, 0, 1, 1], [], []>} : vector<1x32xbf16>, vector<32x128xbf16>, vector<1x128xf32> -> vector<1x128xf32>
    %84 = arith.addf %81, %83 : vector<1x128xf32>
    %85 = arith.negf %84 : vector<1x128xf32>
    %86 = math.exp %85 : vector<1x128xf32>
    %cst_24 = arith.constant 1.000000e+00 : f32
    %87 = vector.broadcast %cst_24 : f32 to vector<1x128xf32>
    %88 = arith.addf %87, %86 : vector<1x128xf32>
    %89 = arith.divf %87, %88 : vector<1x128xf32>
    %90 = vector.extract_strided_slice %89 {offsets = [0, 0], sizes = [1, 32], strides = [1, 1]} : vector<1x128xf32> to vector<1x32xf32>
    %91 = vector.extract_strided_slice %89 {offsets = [0, 32], sizes = [1, 32], strides = [1, 1]} : vector<1x128xf32> to vector<1x32xf32>
    %92 = vector.extract_strided_slice %89 {offsets = [0, 64], sizes = [1, 32], strides = [1, 1]} : vector<1x128xf32> to vector<1x32xf32>
    %cst_25 = arith.constant 2.000000e+00 : f32
    %93 = vector.broadcast %cst_25 : f32 to vector<1x32xf32>
    %94 = arith.mulf %93, %92 : vector<1x32xf32>
    %cst_26 = arith.constant 1.000000e+00 : f32
    %95 = vector.broadcast %cst_26 : f32 to vector<1x32xf32>
    %96 = arith.subf %94, %95 : vector<1x32xf32>
    %97 = vector.extract_strided_slice %89 {offsets = [0, 96], sizes = [1, 32], strides = [1, 1]} : vector<1x128xf32> to vector<1x32xf32>
    %98 = arith.mulf %91, %77 : vector<1x32xf32>
    %99 = arith.mulf %90, %96 : vector<1x32xf32>
    %100 = arith.addf %98, %99 : vector<1x32xf32>
    %101 = math.tanh %100 : vector<1x32xf32>
    %102 = arith.mulf %97, %101 : vector<1x32xf32>
    %c3 = arith.constant 3 : index
    %c0_27 = arith.constant 0 : index
    %103 = vector.load %arg5[%c3, %c0_27] : memref<8x32xf32, #tpu.memory_space<vmem>>, vector<1x32xf32>
    tpu.vector_store %arg5[%c3, %c0_27], %102 {strides = array<i32>} : memref<8x32xf32, #tpu.memory_space<vmem>>, vector<1x32xf32>,
    %104 = vector.extract_strided_slice %10 {offsets = [4, 0], sizes = [1, 128], strides = [1, 1]} : vector<8x128xf32> to vector<1x128xf32>
    %105 = arith.truncf %102 : vector<1x32xf32> to vector<1x32xbf16>
    %cst_28 = arith.constant dense<0.000000e+00> : vector<1x128xf32>
    %106 = tpu.matmul %105, %11, %cst_28 {dimension_numbers = #tpu.dot_dimension_numbers<[1], [0], [0], [1], [0, 0, 1, 1], [], []>} : vector<1x32xbf16>, vector<32x128xbf16>, vector<1x128xf32> -> vector<1x128xf32>
    %107 = arith.addf %104, %106 : vector<1x128xf32>
    %108 = arith.negf %107 : vector<1x128xf32>
    %109 = math.exp %108 : vector<1x128xf32>
    %cst_29 = arith.constant 1.000000e+00 : f32
    %110 = vector.broadcast %cst_29 : f32 to vector<1x128xf32>
    %111 = arith.addf %110, %109 : vector<1x128xf32>
    %112 = arith.divf %110, %111 : vector<1x128xf32>
    %113 = vector.extract_strided_slice %112 {offsets = [0, 0], sizes = [1, 32], strides = [1, 1]} : vector<1x128xf32> to vector<1x32xf32>
    %114 = vector.extract_strided_slice %112 {offsets = [0, 32], sizes = [1, 32], strides = [1, 1]} : vector<1x128xf32> to vector<1x32xf32>
    %115 = vector.extract_strided_slice %112 {offsets = [0, 64], sizes = [1, 32], strides = [1, 1]} : vector<1x128xf32> to vector<1x32xf32>
    %cst_30 = arith.constant 2.000000e+00 : f32
    %116 = vector.broadcast %cst_30 : f32 to vector<1x32xf32>
    %117 = arith.mulf %116, %115 : vector<1x32xf32>
    %cst_31 = arith.constant 1.000000e+00 : f32
    %118 = vector.broadcast %cst_31 : f32 to vector<1x32xf32>
    %119 = arith.subf %117, %118 : vector<1x32xf32>
    %120 = vector.extract_strided_slice %112 {offsets = [0, 96], sizes = [1, 32], strides = [1, 1]} : vector<1x128xf32> to vector<1x32xf32>
    %121 = arith.mulf %114, %100 : vector<1x32xf32>
    %122 = arith.mulf %113, %119 : vector<1x32xf32>
    %123 = arith.addf %121, %122 : vector<1x32xf32>
    %124 = math.tanh %123 : vector<1x32xf32>
    %125 = arith.mulf %120, %124 : vector<1x32xf32>
    %c4 = arith.constant 4 : index
    %c0_32 = arith.constant 0 : index
    %126 = vector.load %arg5[%c4, %c0_32] : memref<8x32xf32, #tpu.memory_space<vmem>>, vector<1x32xf32>
    tpu.vector_store %arg5[%c4, %c0_32], %125 {strides = array<i32>} : memref<8x32xf32, #tpu.memory_space<vmem>>, vector<1x32xf32>,
    %127 = vector.extract_strided_slice %10 {offsets = [5, 0], sizes = [1, 128], strides = [1, 1]} : vector<8x128xf32> to vector<1x128xf32>
    %128 = arith.truncf %125 : vector<1x32xf32> to vector<1x32xbf16>
    %cst_33 = arith.constant dense<0.000000e+00> : vector<1x128xf32>
    %129 = tpu.matmul %128, %11, %cst_33 {dimension_numbers = #tpu.dot_dimension_numbers<[1], [0], [0], [1], [0, 0, 1, 1], [], []>} : vector<1x32xbf16>, vector<32x128xbf16>, vector<1x128xf32> -> vector<1x128xf32>
    %130 = arith.addf %127, %129 : vector<1x128xf32>
    %131 = arith.negf %130 : vector<1x128xf32>
    %132 = math.exp %131 : vector<1x128xf32>
    %cst_34 = arith.constant 1.000000e+00 : f32
    %133 = vector.broadcast %cst_34 : f32 to vector<1x128xf32>
    %134 = arith.addf %133, %132 : vector<1x128xf32>
    %135 = arith.divf %133, %134 : vector<1x128xf32>
    %136 = vector.extract_strided_slice %135 {offsets = [0, 0], sizes = [1, 32], strides = [1, 1]} : vector<1x128xf32> to vector<1x32xf32>
    %137 = vector.extract_strided_slice %135 {offsets = [0, 32], sizes = [1, 32], strides = [1, 1]} : vector<1x128xf32> to vector<1x32xf32>
    %138 = vector.extract_strided_slice %135 {offsets = [0, 64], sizes = [1, 32], strides = [1, 1]} : vector<1x128xf32> to vector<1x32xf32>
    %cst_35 = arith.constant 2.000000e+00 : f32
    %139 = vector.broadcast %cst_35 : f32 to vector<1x32xf32>
    %140 = arith.mulf %139, %138 : vector<1x32xf32>
    %cst_36 = arith.constant 1.000000e+00 : f32
    %141 = vector.broadcast %cst_36 : f32 to vector<1x32xf32>
    %142 = arith.subf %140, %141 : vector<1x32xf32>
    %143 = vector.extract_strided_slice %135 {offsets = [0, 96], sizes = [1, 32], strides = [1, 1]} : vector<1x128xf32> to vector<1x32xf32>
    %144 = arith.mulf %137, %123 : vector<1x32xf32>
    %145 = arith.mulf %136, %142 : vector<1x32xf32>
    %146 = arith.addf %144, %145 : vector<1x32xf32>
    %147 = math.tanh %146 : vector<1x32xf32>
    %148 = arith.mulf %143, %147 : vector<1x32xf32>
    %c5 = arith.constant 5 : index
    %c0_37 = arith.constant 0 : index
    %149 = vector.load %arg5[%c5, %c0_37] : memref<8x32xf32, #tpu.memory_space<vmem>>, vector<1x32xf32>
    tpu.vector_store %arg5[%c5, %c0_37], %148 {strides = array<i32>} : memref<8x32xf32, #tpu.memory_space<vmem>>, vector<1x32xf32>,
    %150 = vector.extract_strided_slice %10 {offsets = [6, 0], sizes = [1, 128], strides = [1, 1]} : vector<8x128xf32> to vector<1x128xf32>
    %151 = arith.truncf %148 : vector<1x32xf32> to vector<1x32xbf16>
    %cst_38 = arith.constant dense<0.000000e+00> : vector<1x128xf32>
    %152 = tpu.matmul %151, %11, %cst_38 {dimension_numbers = #tpu.dot_dimension_numbers<[1], [0], [0], [1], [0, 0, 1, 1], [], []>} : vector<1x32xbf16>, vector<32x128xbf16>, vector<1x128xf32> -> vector<1x128xf32>
    %153 = arith.addf %150, %152 : vector<1x128xf32>
    %154 = arith.negf %153 : vector<1x128xf32>
    %155 = math.exp %154 : vector<1x128xf32>
    %cst_39 = arith.constant 1.000000e+00 : f32
    %156 = vector.broadcast %cst_39 : f32 to vector<1x128xf32>
    %157 = arith.addf %156, %155 : vector<1x128xf32>
    %158 = arith.divf %156, %157 : vector<1x128xf32>
    %159 = vector.extract_strided_slice %158 {offsets = [0, 0], sizes = [1, 32], strides = [1, 1]} : vector<1x128xf32> to vector<1x32xf32>
    %160 = vector.extract_strided_slice %158 {offsets = [0, 32], sizes = [1, 32], strides = [1, 1]} : vector<1x128xf32> to vector<1x32xf32>
    %161 = vector.extract_strided_slice %158 {offsets = [0, 64], sizes = [1, 32], strides = [1, 1]} : vector<1x128xf32> to vector<1x32xf32>
    %cst_40 = arith.constant 2.000000e+00 : f32
    %162 = vector.broadcast %cst_40 : f32 to vector<1x32xf32>
    %163 = arith.mulf %162, %161 : vector<1x32xf32>
    %cst_41 = arith.constant 1.000000e+00 : f32
    %164 = vector.broadcast %cst_41 : f32 to vector<1x32xf32>
    %165 = arith.subf %163, %164 : vector<1x32xf32>
    %166 = vector.extract_strided_slice %158 {offsets = [0, 96], sizes = [1, 32], strides = [1, 1]} : vector<1x128xf32> to vector<1x32xf32>
    %167 = arith.mulf %160, %146 : vector<1x32xf32>
    %168 = arith.mulf %159, %165 : vector<1x32xf32>
    %169 = arith.addf %167, %168 : vector<1x32xf32>
    %170 = math.tanh %169 : vector<1x32xf32>
    %171 = arith.mulf %166, %170 : vector<1x32xf32>
    %c6 = arith.constant 6 : index
    %c0_42 = arith.constant 0 : index
    %172 = vector.load %arg5[%c6, %c0_42] : memref<8x32xf32, #tpu.memory_space<vmem>>, vector<1x32xf32>
    tpu.vector_store %arg5[%c6, %c0_42], %171 {strides = array<i32>} : memref<8x32xf32, #tpu.memory_space<vmem>>, vector<1x32xf32>,
    %173 = vector.extract_strided_slice %10 {offsets = [7, 0], sizes = [1, 128], strides = [1, 1]} : vector<8x128xf32> to vector<1x128xf32>
    %174 = arith.truncf %171 : vector<1x32xf32> to vector<1x32xbf16>
    %cst_43 = arith.constant dense<0.000000e+00> : vector<1x128xf32>
    %175 = tpu.matmul %174, %11, %cst_43 {dimension_numbers = #tpu.dot_dimension_numbers<[1], [0], [0], [1], [0, 0, 1, 1], [], []>} : vector<1x32xbf16>, vector<32x128xbf16>, vector<1x128xf32> -> vector<1x128xf32>
    %176 = arith.addf %173, %175 : vector<1x128xf32>
    %177 = arith.negf %176 : vector<1x128xf32>
    %178 = math.exp %177 : vector<1x128xf32>
    %cst_44 = arith.constant 1.000000e+00 : f32
    %179 = vector.broadcast %cst_44 : f32 to vector<1x128xf32>
    %180 = arith.addf %179, %178 : vector<1x128xf32>
    %181 = arith.divf %179, %180 : vector<1x128xf32>
    %182 = vector.extract_strided_slice %181 {offsets = [0, 0], sizes = [1, 32], strides = [1, 1]} : vector<1x128xf32> to vector<1x32xf32>
    %183 = vector.extract_strided_slice %181 {offsets = [0, 32], sizes = [1, 32], strides = [1, 1]} : vector<1x128xf32> to vector<1x32xf32>
    %184 = vector.extract_strided_slice %181 {offsets = [0, 64], sizes = [1, 32], strides = [1, 1]} : vector<1x128xf32> to vector<1x32xf32>
    %cst_45 = arith.constant 2.000000e+00 : f32
    %185 = vector.broadcast %cst_45 : f32 to vector<1x32xf32>
    %186 = arith.mulf %185, %184 : vector<1x32xf32>
    %cst_46 = arith.constant 1.000000e+00 : f32
    %187 = vector.broadcast %cst_46 : f32 to vector<1x32xf32>
    %188 = arith.subf %186, %187 : vector<1x32xf32>
    %189 = vector.extract_strided_slice %181 {offsets = [0, 96], sizes = [1, 32], strides = [1, 1]} : vector<1x128xf32> to vector<1x32xf32>
    %190 = arith.mulf %183, %169 : vector<1x32xf32>
    %191 = arith.mulf %182, %188 : vector<1x32xf32>
    %192 = arith.addf %190, %191 : vector<1x32xf32>
    %193 = math.tanh %192 : vector<1x32xf32>
    %194 = arith.mulf %189, %193 : vector<1x32xf32>
    %c7 = arith.constant 7 : index
    %c0_47 = arith.constant 0 : index
    %195 = vector.load %arg5[%c7, %c0_47] : memref<8x32xf32, #tpu.memory_space<vmem>>, vector<1x32xf32>
    tpu.vector_store %arg5[%c7, %c0_47], %194 {strides = array<i32>} : memref<8x32xf32, #tpu.memory_space<vmem>>, vector<1x32xf32>,
    %c0_48 = arith.constant 0 : index
    %c0_49 = arith.constant 0 : index
    %196 = vector.load %arg5[%c0_48, %c0_49] : memref<8x32xf32, #tpu.memory_space<vmem>>, vector<8x32xf32>
    %197 = vector.broadcast %4 : vector<1x32xf32> to vector<8x32xf32>
    %198 = arith.mulf %196, %197 : vector<8x32xf32>
    %cst_50 = arith.constant dense<0.000000e+00> : vector<8xf32>
    %199 = vector.multi_reduction <add>, %198, %cst_50 [1] : vector<8x32xf32> to vector<8xf32>
    %200 = vector.shape_cast %199 : vector<8xf32> to vector<8x1xf32>
    %201 = vector.broadcast %5 : vector<1x1xf32> to vector<8x1xf32>
    %202 = arith.addf %200, %201 : vector<8x1xf32>
    %c0_51 = arith.constant 0 : index
    %c0_52 = arith.constant 0 : index
    %203 = vector.load %arg4[%c0_51, %c0_52] : memref<8x1xf32, #tpu.memory_space<vmem>>, vector<8x1xf32>
    tpu.vector_store %arg4[%c0_51, %c0_52], %202 {strides = array<i32>} : memref<8x1xf32, #tpu.memory_space<vmem>>, vector<8x1xf32>,
    return
  }
}

</mosaic_0001>

<llo_original>
// kernel: lstm_forward.1
$region0: #{lstm_forward.1}
  #allocation0 [shape = 'u32[]', space=smem, size = 0x4, offset = 0x4, fixed_abs, tag = 'smem constant byte address 0x4 - core index']
  #allocation1 [shape = 'u32[144,128]{1,0:T(1,128)}', space=vmem, size = 0x12000, scoped, tag = 'internal scratch']
  #allocation2 [shape = 'f32[8,32]{1,0:T(8,128)}', space=vmem, size = 0x1000, scoped, tag = 'scratch operand']
  %s0 = inlined_call_operand.hbm [shape: f32[8,16], index: 0, kind: input, shape index: {}]
  %s1 = inlined_call_operand.hbm [shape: f32[16,128], index: 1, kind: input, shape index: {}]
  %s2 = inlined_call_operand.hbm [shape: bf16[32,128], index: 2, kind: input, shape index: {}]
  %s3 = inlined_call_operand.vmem [shape: f32[8,128], index: 3, kind: input, shape index: {}]
  %s4 = inlined_call_operand.vmem [shape: f32[8,1], index: 4, kind: output, shape index: {}]
  %s5 = sld [smem:[#allocation0]]
  $region38: #{lstm_forward.1} parent=0
    _
  %s7 = ssub.s32 1, %s5
  %s8 = scalar_select 0, %s7, %s5
  $region1: #{lstm_forward.1} parent=0
    #allocation3 [shape = 'u8[4096]{0}', space=vmem, size = 0x1000, scoped, tag = 'input window, operand 0, single buffered']
    #allocation4 [shape = 's32[1]{0}', space=sflag, size = 0x4, scoped, tag = 'scoped memory for lstm_forward.1']
    #allocation5 [shape = 'u8[8192]{0}', space=vmem, size = 0x2000, scoped, tag = 'input window, operand 1, single buffered']
    #allocation6 [shape = 's32[1]{0}', space=sflag, size = 0x4, scoped, tag = 'scoped memory for lstm_forward.1']
    #allocation7 [shape = 'u8[8192]{0}', space=vmem, size = 0x2000, scoped, tag = 'input window, operand 2, single buffered']
    %9 = vsyncpa [#allocation4], 0
    %10 = vsyncpa [#allocation6], 0
    // Predicated region
    $region2: #{lstm_forward.1} parent=1 // pred_check
      _
    $region3: #{lstm_forward.1} parent=1 // pred_check_branch
      %12 = sbr.rel (0) target = $region5
    $region4: #{lstm_forward.1} parent=1 // pred_region
      %s14 = ssub.s32 128, 128
      %15 = vsyncadd [#allocation4], %s14
      %s17 = sshll.u32 [#allocation3], 4
      %s18 = int_to_ptr.vmem [resolvable:$true] %s17
      %20 = dma.hbm_to_vmem [thread:$0]  %s0, 128, %s18, [#allocation4]
    $region5: #{lstm_forward.1} parent=1 // pred_fallthru
      _
    // Predicated region
    $region6: #{lstm_forward.1} parent=1 // pred_check
      _
    $region7: #{lstm_forward.1} parent=1 // pred_check_branch
      %22 = sbr.rel (0) target = $region9
    $region8: #{lstm_forward.1} parent=1 // pred_region
      %s24 = ssub.s32 256, 256
      %25 = vsyncadd [#allocation6], %s24
      %s26 = sshll.u32 [#allocation5], 4
      %s27 = int_to_ptr.vmem [resolvable:$true] %s26
      %32 = dma.hbm_to_vmem [thread:$0]  %s1, 256, %s27, [#allocation6], 128, 128, 8
    $region9: #{lstm_forward.1} parent=1 // pred_fallthru
      _
    // Predicated region
    $region10: #{lstm_forward.1} parent=1 // pred_check
      _
    $region11: #{lstm_forward.1} parent=1 // pred_check_branch
      %34 = sbr.rel (0) target = $region13
    $region12: #{lstm_forward.1} parent=1 // pred_region
      %s36 = ssub.s32 256, 256
      %37 = vsyncadd [#allocation6], %s36
      %s38 = sshll.u32 [#allocation7], 4
      %s39 = int_to_ptr.vmem [resolvable:$true] %s38
      %44 = dma.hbm_to_vmem [thread:$0]  %s2, 256, %s39, [#allocation6], 64, 64, 4
    $region13: #{lstm_forward.1} parent=1 // pred_fallthru
      _
    // Predicated region
    $region14: #{lstm_forward.1} parent=1 // pred_check
      _
    $region15: #{lstm_forward.1} parent=1 // pred_check_branch
      %46 = sbr.rel (0) target = $region17
    $region16: #{lstm_forward.1} parent=1 // pred_region
      _
    $region17: #{lstm_forward.1} parent=1 // pred_fallthru
      _
    // Predicated region
    $region18: #{lstm_forward.1} parent=1 // pred_check
      _
    $region19: #{lstm_forward.1} parent=1 // pred_check_branch
      %48 = sbr.rel (0) target = $region21
    $region20: #{lstm_forward.1} parent=1 // pred_region
      %49 = dma.done [#allocation4], 128
    $region21: #{lstm_forward.1} parent=1 // pred_fallthru
      _
    // Predicated region
    $region22: #{lstm_forward.1} parent=1 // pred_check
      _
    $region23: #{lstm_forward.1} parent=1 // pred_check_branch
      %51 = sbr.rel (0) target = $region25
    $region24: #{lstm_forward.1} parent=1 // pred_region
      %52 = dma.done [#allocation6], 256
    $region25: #{lstm_forward.1} parent=1 // pred_fallthru
      _
    // Predicated region
    $region26: #{lstm_forward.1} parent=1 // pred_check
      _
    $region27: #{lstm_forward.1} parent=1 // pred_check_branch
      %54 = sbr.rel (0) target = $region29
    $region28: #{lstm_forward.1} parent=1 // pred_region
      %55 = dma.done [#allocation6], 256
    $region29: #{lstm_forward.1} parent=1 // pred_fallthru
      _
    %v57 = vld [vmem:[%s3] sm:$0xff]
    %v58 = vld [vmem:[#allocation3] sm:$0xff]
    %v59 = vld [vmem:[#allocation5] sm:$0xff]
    %v60 = vld [vmem:[#allocation5 + $0x8] sm:$0xff]
    %v61 = vlaneseq
    %v62 = vshrl.u32 %v61, 7
    %v63 = vsub.s32 0, %v62
    %v64 = vrot.slane %v57, %v63
    %vm65 = vcmask 130048
    %v67 = vsel %vm65, %v58, 0
    %69 = vmatprep.subr.mxu0 0.0
    %70 = vmatpush1.msra.mxu0 %v59
    %71 = vmatprep.subr.mxu0 0.0
    %72 = vmatpush1.msra.mxu0 %v60
    %73 = vmatprep.subr.mxu0 0.0
    %74 = vmatpush1.msra.mxu0 0.0
    %75 = vmatprep.subr.mxu0 0.0
    %76 = vmatpush1.msra.mxu0 0.0
    %77 = vmatprep.subr.mxu0 0.0
    %78 = vmatpush1.msra.mxu0 0.0
    %79 = vmatprep.subr.mxu0 0.0
    %80 = vmatpush1.msra.mxu0 0.0
    %81 = vmatprep.subr.mxu0 0.0
    %82 = vmatpush1.msra.mxu0 0.0
    %83 = vmatprep.subr.mxu0 0.0
    %84 = vmatpush1.msra.mxu0 0.0
    %85 = vmatprep.subr.mxu0 0.0
    %86 = vmatpush1.msra.mxu0 0.0
    %87 = vmatprep.subr.mxu0 0.0
    %88 = vmatpush1.msra.mxu0 0.0
    %89 = vmatprep.subr.mxu0 0.0
    %90 = vmatpush1.msra.mxu0 0.0
    %91 = vmatprep.subr.mxu0 0.0
    %92 = vmatpush1.msra.mxu0 0.0
    %93 = vmatprep.subr.mxu0 0.0
    %94 = vmatpush1.msra.mxu0 0.0
    %95 = vmatprep.subr.mxu0 0.0
    %96 = vmatpush1.msra.mxu0 0.0
    %97 = vmatprep.subr.mxu0 0.0
    %98 = vmatpush1.msra.mxu0 0.0
    %99 = vmatprep.subr.mxu0 0.0
    %100 = vmatpush1.msra.mxu0 0.0
    %101 = vmatprep.subr.mxu0 0.0
    %102 = vmatpush1.msra.mxu0 0.0
    %103 = vmatprep.subr.mxu0 0.0
    %104 = vmatpush1.msra.mxu0 0.0
    %105 = vmatprep.subr.mxu0 0.0
    %106 = vmatpush1.msra.mxu0 0.0
    %107 = vmatprep.subr.mxu0 0.0
    %108 = vmatpush1.msra.mxu0 0.0
    %109 = vmatprep.subr.mxu0 0.0
    %110 = vmatpush1.msra.mxu0 0.0
    %111 = vmatprep.subr.mxu0 0.0
    %112 = vmatpush1.msra.mxu0 0.0
    %113 = vmatprep.subr.mxu0 0.0
    %114 = vmatpush1.msra.mxu0 0.0
    %115 = vmatprep.subr.mxu0 0.0
    %116 = vmatpush1.msra.mxu0 0.0
    %117 = vmatprep.subr.mxu0 0.0
    %118 = vmatpush1.msra.mxu0 0.0
    %119 = vmatprep.subr.mxu0 0.0
    %120 = vmatpush1.msra.mxu0 0.0
    %121 = vmatprep.subr.mxu0 0.0
    %122 = vmatpush1.msra.mxu0 0.0
    %123 = vmatprep.subr.mxu0 0.0
    %124 = vmatpush1.msra.mxu0 0.0
    %125 = vmatprep.subr.mxu0 0.0
    %126 = vmatpush1.msra.mxu0 0.0
    %127 = vmatprep.subr.mxu0 0.0
    %128 = vmatpush1.msra.mxu0 0.0
    %129 = vmatprep.subr.mxu0 0.0
    %130 = vmatpush1.msra.mxu0 0.0
    %131 = vmatprep.subr.mxu0 0.0
    %132 = vmatpush1.msra.mxu0 0.0
    %133 = vmatprep.mubr.f32.mxu0 0.0
    %134 = vmatmul.mubr.f32.gmra.mrb[0].mxu0 %v67
    %v135 = vpop.f32.mrb[0].mxu0
    %v136 = vadd.f32 %v64, %v135
    %v137 = vpop.f32.mrb[0].mxu0
    %138 = vdwg.mxu0
    %v139 = vld [vmem:[#allocation7] sm:$0xf]
    %v140 = vld [vmem:[#allocation7 + $0x4] sm:$0xf]
    %v141 = vld [vmem:[#allocation7 + $0x8] sm:$0xf]
    %v142 = vld [vmem:[#allocation7 + $0xc] sm:$0xf]
    %v143 = vpack.c.bf16 %v57, %v57
    %v145 = vshrl.u32 %v143, 16
    %v151 = vunpack.c.l.b16 %v139
    %v152 = vunpack.c.l.b16 %v140
    %v153 = vunpack.c.l.b16 %v141
    %v154 = vunpack.c.l.b16 %v142
    %v155 = vpack.c.b16 %v152, %v151
    %v156 = vpack.c.b16 %v154, %v153
    %vm159 = vcmask 261120
    %v161 = vsel %vm159, %v145, 0
    %163 = vmatprep.subr.bf16.mxu0 0
    %164 = vmatpush1.bf16.msra.mxu0 %v155
    %165 = vmatprep.subr.bf16.mxu0 0
    %166 = vmatpush1.bf16.msra.mxu0 %v156
    %167 = vmatprep.subr.bf16.mxu0 0
    %168 = vmatpush1.bf16.msra.mxu0 0
    %169 = vmatprep.subr.bf16.mxu0 0
    %170 = vmatpush1.bf16.msra.mxu0 0
    %171 = vmatprep.subr.bf16.mxu0 0
    %172 = vmatpush1.bf16.msra.mxu0 0
    %173 = vmatprep.subr.bf16.mxu0 0
    %174 = vmatpush1.bf16.msra.mxu0 0
    %175 = vmatprep.subr.bf16.mxu0 0
    %176 = vmatpush1.bf16.msra.mxu0 0
    %177 = vmatprep.subr.bf16.mxu0 0
    %178 = vmatpush1.bf16.msra.mxu0 0
    %179 = vmatprep.subr.bf16.mxu0 0
    %180 = vmatpush1.bf16.msra.mxu0 0
    %181 = vmatprep.subr.bf16.mxu0 0
    %182 = vmatpush1.bf16.msra.mxu0 0
    %183 = vmatprep.subr.bf16.mxu0 0
    %184 = vmatpush1.bf16.msra.mxu0 0
    %185 = vmatprep.subr.bf16.mxu0 0
    %186 = vmatpush1.bf16.msra.mxu0 0
    %187 = vmatprep.subr.bf16.mxu0 0
    %188 = vmatpush1.bf16.msra.mxu0 0
    %189 = vmatprep.subr.bf16.mxu0 0
    %190 = vmatpush1.bf16.msra.mxu0 0
    %191 = vmatprep.subr.bf16.mxu0 0
    %192 = vmatpush1.bf16.msra.mxu0 0
    %193 = vmatprep.subr.bf16.mxu0 0
    %194 = vmatpush1.bf16.msra.mxu0 0
    %195 = vmatprep.mubr.bf16.mxu0 0
    %196 = vmatmul.mubr.bf16.gmra.mrb[0].mxu0 %v161
    %v197 = vpop.f32.mrb[0].mxu0
    %v198 = vadd.f32 0.0, %v197
    %v199 = vpop.f32.mrb[0].mxu0
    %v200 = vpop.f32.mrb[0].mxu0
    %v201 = vpop.f32.mrb[0].mxu0
    %202 = vdwg.mxu0
    %v203 = vadd.f32 %v136, %v198
    %v204 = vxor.u32 %v203, 2147483648
    %v205 = vmul.f32 %v204, 1.442695
    %v206 = vpow.pop %v205
    %v207 = vadd.f32 %v206, 1.0
    %v208 = vrcp.pop %v207
    %v209 = vmul.f32 1.0, %v208
    %v210 = vmul.f32 %v209, 2.0
    %v211 = vsub.f32 %v210, 1.0
    %v213 = vrot.slane %v57, 2
    %214 = vrot.lane.b32.xlu0 %v213, 32
    %v215 = vpop.permute.xlu0 %214
    %v217 = vmul.f32 %v209, %v215
    %219 = vrot.lane.b32.xlu0 %v211, 64
    %v220 = vpop.permute.xlu0 %219
    %v222 = vmul.f32 %v209, %v220
    %224 = vrot.lane.b32.xlu0 %v222, 32
    %v225 = vpop.permute.xlu0 %224
    %v227 = vadd.f32 %v217, %v225
    %v228 = vtanh.pop %v227
    %230 = vrot.lane.b32.xlu0 %v228, 64
    %v231 = vpop.permute.xlu0 %230
    %v233 = vmul.f32 %v209, %v231
    %235 = vrot.lane.b32.xlu0 %v233, 32
    %v236 = vpop.permute.xlu0 %235
    %vm238 = vcmask 253952
    %239 = vst.msk [vmem:[#allocation2] sm:$0x1] %vm238, %v236
    %v240 = vpack.c.bf16 %v233, %v233
    %242 = vrot.lane.b32.xlu0 %v240, 32
    %v243 = vpop.permute.xlu0 %242
    %v245 = vsel %vm159, %v243, 0
    %247 = vmatprep.subr.bf16.mxu0 0
    %248 = vmatpush1.bf16.msra.mxu0 %v155
    %249 = vmatprep.subr.bf16.mxu0 0
    %250 = vmatpush1.bf16.msra.mxu0 %v156
    %251 = vmatprep.subr.bf16.mxu0 0
    %252 = vmatpush1.bf16.msra.mxu0 0
    %253 = vmatprep.subr.bf16.mxu0 0
    %254 = vmatpush1.bf16.msra.mxu0 0
    %255 = vmatprep.subr.bf16.mxu0 0
    %256 = vmatpush1.bf16.msra.mxu0 0
    %257 = vmatprep.subr.bf16.mxu0 0
    %258 = vmatpush1.bf16.msra.mxu0 0
    %259 = vmatprep.subr.bf16.mxu0 0
    %260 = vmatpush1.bf16.msra.mxu0 0
    %261 = vmatprep.subr.bf16.mxu0 0
    %262 = vmatpush1.bf16.msra.mxu0 0
    %263 = vmatprep.subr.bf16.mxu0 0
    %264 = vmatpush1.bf16.msra.mxu0 0
    %265 = vmatprep.subr.bf16.mxu0 0
    %266 = vmatpush1.bf16.msra.mxu0 0
    %267 = vmatprep.subr.bf16.mxu0 0
    %268 = vmatpush1.bf16.msra.mxu0 0
    %269 = vmatprep.subr.bf16.mxu0 0
    %270 = vmatpush1.bf16.msra.mxu0 0
    %271 = vmatprep.subr.bf16.mxu0 0
    %272 = vmatpush1.bf16.msra.mxu0 0
    %273 = vmatprep.subr.bf16.mxu0 0
    %274 = vmatpush1.bf16.msra.mxu0 0
    %275 = vmatprep.subr.bf16.mxu0 0
    %276 = vmatpush1.bf16.msra.mxu0 0
    %277 = vmatprep.subr.bf16.mxu0 0
    %278 = vmatpush1.bf16.msra.mxu0 0
    %279 = vmatprep.mubr.bf16.mxu0 0
    %280 = vmatmul.mubr.bf16.gmra.mrb[0].mxu0 %v245
    %v281 = vpop.f32.mrb[0].mxu0
    %v282 = vadd.f32 0.0, %v281
    %v283 = vpop.f32.mrb[0].mxu0
    %v284 = vpop.f32.mrb[0].mxu0
    %v285 = vpop.f32.mrb[0].mxu0
    %286 = vdwg.mxu0
    %v288 = vrot.slane %v282, 7
    %v290 = vadd.f32 %v136, %v288
    %v291 = vxor.u32 %v290, 2147483648
    %v292 = vmul.f32 %v291, 1.442695
    %v293 = vpow.pop %v292
    %v294 = vadd.f32 %v293, 1.0
    %v295 = vrcp.pop %v294
    %v296 = vmul.f32 1.0, %v295
    %v297 = vmul.f32 %v296, 2.0
    %v298 = vsub.f32 %v297, 1.0
    %v300 = vrot.slane %v227, 7
    %v302 = vmul.f32 %v296, %v300
    %304 = vrot.lane.b32.xlu0 %v298, 64
    %v305 = vpop.permute.xlu0 %304
    %v307 = vmul.f32 %v296, %v305
    %309 = vrot.lane.b32.xlu0 %v307, 32
    %v310 = vpop.permute.xlu0 %309
    %v312 = vadd.f32 %v302, %v310
    %v313 = vtanh.pop %v312
    %315 = vrot.lane.b32.xlu0 %v313, 64
    %v316 = vpop.permute.xlu0 %315
    %v318 = vmul.f32 %v296, %v316
    %320 = vrot.lane.b32.xlu0 %v318, 32
    %v321 = vpop.permute.xlu0 %320
    %vm323 = vcmask 254977
    %324 = vst.msk [vmem:[#allocation2] sm:$0x2] %vm323, %v321
    %v325 = vpack.c.bf16 %v318, %v318
    %v327 = vshrl.u32 %v325, 16
    %329 = vrot.lane.b32.xlu0 %v327, 32
    %v330 = vpop.permute.xlu0 %329
    %v332 = vsel %vm159, %v330, 0
    %334 = vmatprep.subr.bf16.mxu0 0
    %335 = vmatpush1.bf16.msra.mxu0 %v155
    %336 = vmatprep.subr.bf16.mxu0 0
    %337 = vmatpush1.bf16.msra.mxu0 %v156
    %338 = vmatprep.subr.bf16.mxu0 0
    %339 = vmatpush1.bf16.msra.mxu0 0
    %340 = vmatprep.subr.bf16.mxu0 0
    %341 = vmatpush1.bf16.msra.mxu0 0
    %342 = vmatprep.subr.bf16.mxu0 0
    %343 = vmatpush1.bf16.msra.mxu0 0
    %344 = vmatprep.subr.bf16.mxu0 0
    %345 = vmatpush1.bf16.msra.mxu0 0
    %346 = vmatprep.subr.bf16.mxu0 0
    %347 = vmatpush1.bf16.msra.mxu0 0
    %348 = vmatprep.subr.bf16.mxu0 0
    %349 = vmatpush1.bf16.msra.mxu0 0
    %350 = vmatprep.subr.bf16.mxu0 0
    %351 = vmatpush1.bf16.msra.mxu0 0
    %352 = vmatprep.subr.bf16.mxu0 0
    %353 = vmatpush1.bf16.msra.mxu0 0
    %354 = vmatprep.subr.bf16.mxu0 0
    %355 = vmatpush1.bf16.msra.mxu0 0
    %356 = vmatprep.subr.bf16.mxu0 0
    %357 = vmatpush1.bf16.msra.mxu0 0
    %358 = vmatprep.subr.bf16.mxu0 0
    %359 = vmatpush1.bf16.msra.mxu0 0
    %360 = vmatprep.subr.bf16.mxu0 0
    %361 = vmatpush1.bf16.msra.mxu0 0
    %362 = vmatprep.subr.bf16.mxu0 0
    %363 = vmatpush1.bf16.msra.mxu0 0
    %364 = vmatprep.subr.bf16.mxu0 0
    %365 = vmatpush1.bf16.msra.mxu0 0
    %366 = vmatprep.mubr.bf16.mxu0 0
    %367 = vmatmul.mubr.bf16.gmra.mrb[0].mxu0 %v332
    %v368 = vpop.f32.mrb[0].mxu0
    %v369 = vadd.f32 0.0, %v368
    %v370 = vpop.f32.mrb[0].mxu0
    %v371 = vpop.f32.mrb[0].mxu0
    %v372 = vpop.f32.mrb[0].mxu0
    %373 = vdwg.mxu0
    %v375 = vrot.slane %v369, 6
    %v377 = vadd.f32 %v136, %v375
    %v378 = vxor.u32 %v377, 2147483648
    %v379 = vmul.f32 %v378, 1.442695
    %v380 = vpow.pop %v379
    %v381 = vadd.f32 %v380, 1.0
    %v382 = vrcp.pop %v381
    %v383 = vmul.f32 1.0, %v382
    %v384 = vmul.f32 %v383, 2.0
    %v385 = vsub.f32 %v384, 1.0
    %v387 = vrot.slane %v312, 7
    %v389 = vmul.f32 %v383, %v387
    %391 = vrot.lane.b32.xlu0 %v385, 64
    %v392 = vpop.permute.xlu0 %391
    %v394 = vmul.f32 %v383, %v392
    %396 = vrot.lane.b32.xlu0 %v394, 32
    %v397 = vpop.permute.xlu0 %396
    %v399 = vadd.f32 %v389, %v397
    %v400 = vtanh.pop %v399
    %402 = vrot.lane.b32.xlu0 %v400, 64
    %v403 = vpop.permute.xlu0 %402
    %v405 = vmul.f32 %v383, %v403
    %407 = vrot.lane.b32.xlu0 %v405, 32
    %v408 = vpop.permute.xlu0 %407
    %vm410 = vcmask 256002
    %411 = vst.msk [vmem:[#allocation2] sm:$0x4] %vm410, %v408
    %v412 = vpack.c.bf16 %v405, %v405
    %v414 = vrot.slane %v412, 1
    %415 = vrot.lane.b32.xlu0 %v414, 32
    %v416 = vpop.permute.xlu0 %415
    %v418 = vsel %vm159, %v416, 0
    %420 = vmatprep.subr.bf16.mxu0 0
    %421 = vmatpush1.bf16.msra.mxu0 %v155
    %422 = vmatprep.subr.bf16.mxu0 0
    %423 = vmatpush1.bf16.msra.mxu0 %v156
    %424 = vmatprep.subr.bf16.mxu0 0
    %425 = vmatpush1.bf16.msra.mxu0 0
    %426 = vmatprep.subr.bf16.mxu0 0
    %427 = vmatpush1.bf16.msra.mxu0 0
    %428 = vmatprep.subr.bf16.mxu0 0
    %429 = vmatpush1.bf16.msra.mxu0 0
    %430 = vmatprep.subr.bf16.mxu0 0
    %431 = vmatpush1.bf16.msra.mxu0 0
    %432 = vmatprep.subr.bf16.mxu0 0
    %433 = vmatpush1.bf16.msra.mxu0 0
    %434 = vmatprep.subr.bf16.mxu0 0
    %435 = vmatpush1.bf16.msra.mxu0 0
    %436 = vmatprep.subr.bf16.mxu0 0
    %437 = vmatpush1.bf16.msra.mxu0 0
    %438 = vmatprep.subr.bf16.mxu0 0
    %439 = vmatpush1.bf16.msra.mxu0 0
    %440 = vmatprep.subr.bf16.mxu0 0
    %441 = vmatpush1.bf16.msra.mxu0 0
    %442 = vmatprep.subr.bf16.mxu0 0
    %443 = vmatpush1.bf16.msra.mxu0 0
    %444 = vmatprep.subr.bf16.mxu0 0
    %445 = vmatpush1.bf16.msra.mxu0 0
    %446 = vmatprep.subr.bf16.mxu0 0
    %447 = vmatpush1.bf16.msra.mxu0 0
    %448 = vmatprep.subr.bf16.mxu0 0
    %449 = vmatpush1.bf16.msra.mxu0 0
    %450 = vmatprep.subr.bf16.mxu0 0
    %451 = vmatpush1.bf16.msra.mxu0 0
    %452 = vmatprep.mubr.bf16.mxu0 0
    %453 = vmatmul.mubr.bf16.gmra.mrb[0].mxu0 %v418
    %v454 = vpop.f32.mrb[0].mxu0
    %v455 = vadd.f32 0.0, %v454
    %v456 = vpop.f32.mrb[0].mxu0
    %v457 = vpop.f32.mrb[0].mxu0
    %v458 = vpop.f32.mrb[0].mxu0
    %459 = vdwg.mxu0
    %v461 = vrot.slane %v455, 5
    %v463 = vadd.f32 %v136, %v461
    %v464 = vxor.u32 %v463, 2147483648
    %v465 = vmul.f32 %v464, 1.442695
    %v466 = vpow.pop %v465
    %v467 = vadd.f32 %v466, 1.0
    %v468 = vrcp.pop %v467
    %v469 = vmul.f32 1.0, %v468
    %v470 = vmul.f32 %v469, 2.0
    %v471 = vsub.f32 %v470, 1.0
    %v473 = vrot.slane %v399, 7
    %v475 = vmul.f32 %v469, %v473
    %477 = vrot.lane.b32.xlu0 %v471, 64
    %v478 = vpop.permute.xlu0 %477
    %v480 = vmul.f32 %v469, %v478
    %482 = vrot.lane.b32.xlu0 %v480, 32
    %v483 = vpop.permute.xlu0 %482
    %v485 = vadd.f32 %v475, %v483
    %v486 = vtanh.pop %v485
    %488 = vrot.lane.b32.xlu0 %v486, 64
    %v489 = vpop.permute.xlu0 %488
    %v491 = vmul.f32 %v469, %v489
    %493 = vrot.lane.b32.xlu0 %v491, 32
    %v494 = vpop.permute.xlu0 %493
    %vm496 = vcmask 257027
    %497 = vst.msk [vmem:[#allocation2] sm:$0x8] %vm496, %v494
    %v498 = vpack.c.bf16 %v491, %v491
    %v500 = vshrl.u32 %v498, 16
    %v502 = vrot.slane %v500, 1
    %503 = vrot.lane.b32.xlu0 %v502, 32
    %v504 = vpop.permute.xlu0 %503
    %v506 = vsel %vm159, %v504, 0
    %508 = vmatprep.subr.bf16.mxu0 0
    %509 = vmatpush1.bf16.msra.mxu0 %v155
    %510 = vmatprep.subr.bf16.mxu0 0
    %511 = vmatpush1.bf16.msra.mxu0 %v156
    %512 = vmatprep.subr.bf16.mxu0 0
    %513 = vmatpush1.bf16.msra.mxu0 0
    %514 = vmatprep.subr.bf16.mxu0 0
    %515 = vmatpush1.bf16.msra.mxu0 0
    %516 = vmatprep.subr.bf16.mxu0 0
    %517 = vmatpush1.bf16.msra.mxu0 0
    %518 = vmatprep.subr.bf16.mxu0 0
    %519 = vmatpush1.bf16.msra.mxu0 0
    %520 = vmatprep.subr.bf16.mxu0 0
    %521 = vmatpush1.bf16.msra.mxu0 0
    %522 = vmatprep.subr.bf16.mxu0 0
    %523 = vmatpush1.bf16.msra.mxu0 0
    %524 = vmatprep.subr.bf16.mxu0 0
    %525 = vmatpush1.bf16.msra.mxu0 0
    %526 = vmatprep.subr.bf16.mxu0 0
    %527 = vmatpush1.bf16.msra.mxu0 0
    %528 = vmatprep.subr.bf16.mxu0 0
    %529 = vmatpush1.bf16.msra.mxu0 0
    %530 = vmatprep.subr.bf16.mxu0 0
    %531 = vmatpush1.bf16.msra.mxu0 0
    %532 = vmatprep.subr.bf16.mxu0 0
    %533 = vmatpush1.bf16.msra.mxu0 0
    %534 = vmatprep.subr.bf16.mxu0 0
    %535 = vmatpush1.bf16.msra.mxu0 0
    %536 = vmatprep.subr.bf16.mxu0 0
    %537 = vmatpush1.bf16.msra.mxu0 0
    %538 = vmatprep.subr.bf16.mxu0 0
    %539 = vmatpush1.bf16.msra.mxu0 0
    %540 = vmatprep.mubr.bf16.mxu0 0
    %541 = vmatmul.mubr.bf16.gmra.mrb[0].mxu0 %v506
    %v542 = vpop.f32.mrb[0].mxu0
    %v543 = vadd.f32 0.0, %v542
    %v544 = vpop.f32.mrb[0].mxu0
    %v545 = vpop.f32.mrb[0].mxu0
    %v546 = vpop.f32.mrb[0].mxu0
    %547 = vdwg.mxu0
    %v549 = vrot.slane %v543, 4
    %v551 = vadd.f32 %v136, %v549
    %v552 = vxor.u32 %v551, 2147483648
    %v553 = vmul.f32 %v552, 1.442695
    %v554 = vpow.pop %v553
    %v555 = vadd.f32 %v554, 1.0
    %v556 = vrcp.pop %v555
    %v557 = vmul.f32 1.0, %v556
    %v558 = vmul.f32 %v557, 2.0
    %v559 = vsub.f32 %v558, 1.0
    %v561 = vrot.slane %v485, 7
    %v563 = vmul.f32 %v557, %v561
    %565 = vrot.lane.b32.xlu0 %v559, 64
    %v566 = vpop.permute.xlu0 %565
    %v568 = vmul.f32 %v557, %v566
    %570 = vrot.lane.b32.xlu0 %v568, 32
    %v571 = vpop.permute.xlu0 %570
    %v573 = vadd.f32 %v563, %v571
    %v574 = vtanh.pop %v573
    %576 = vrot.lane.b32.xlu0 %v574, 64
    %v577 = vpop.permute.xlu0 %576
    %v579 = vmul.f32 %v557, %v577
    %581 = vrot.lane.b32.xlu0 %v579, 32
    %v582 = vpop.permute.xlu0 %581
    %vm584 = vcmask 258052
    %585 = vst.msk [vmem:[#allocation2] sm:$0x10] %vm584, %v582
    %v586 = vpack.c.bf16 %v579, %v579
    %v588 = vrot.slane %v586, 2
    %589 = vrot.lane.b32.xlu0 %v588, 32
    %v590 = vpop.permute.xlu0 %589
    %v592 = vsel %vm159, %v590, 0
    %594 = vmatprep.subr.bf16.mxu0 0
    %595 = vmatpush1.bf16.msra.mxu0 %v155
    %596 = vmatprep.subr.bf16.mxu0 0
    %597 = vmatpush1.bf16.msra.mxu0 %v156
    %598 = vmatprep.subr.bf16.mxu0 0
    %599 = vmatpush1.bf16.msra.mxu0 0
    %600 = vmatprep.subr.bf16.mxu0 0
    %601 = vmatpush1.bf16.msra.mxu0 0
    %602 = vmatprep.subr.bf16.mxu0 0
    %603 = vmatpush1.bf16.msra.mxu0 0
    %604 = vmatprep.subr.bf16.mxu0 0
    %605 = vmatpush1.bf16.msra.mxu0 0
    %606 = vmatprep.subr.bf16.mxu0 0
    %607 = vmatpush1.bf16.msra.mxu0 0
    %608 = vmatprep.subr.bf16.mxu0 0
    %609 = vmatpush1.bf16.msra.mxu0 0
    %610 = vmatprep.subr.bf16.mxu0 0
    %611 = vmatpush1.bf16.msra.mxu0 0
    %612 = vmatprep.subr.bf16.mxu0 0
    %613 = vmatpush1.bf16.msra.mxu0 0
    %614 = vmatprep.subr.bf16.mxu0 0
    %615 = vmatpush1.bf16.msra.mxu0 0
    %616 = vmatprep.subr.bf16.mxu0 0
    %617 = vmatpush1.bf16.msra.mxu0 0
    %618 = vmatprep.subr.bf16.mxu0 0
    %619 = vmatpush1.bf16.msra.mxu0 0
    %620 = vmatprep.subr.bf16.mxu0 0
    %621 = vmatpush1.bf16.msra.mxu0 0
    %622 = vmatprep.subr.bf16.mxu0 0
    %623 = vmatpush1.bf16.msra.mxu0 0
    %624 = vmatprep.subr.bf16.mxu0 0
    %625 = vmatpush1.bf16.msra.mxu0 0
    %626 = vmatprep.mubr.bf16.mxu0 0
    %627 = vmatmul.mubr.bf16.gmra.mrb[0].mxu0 %v592
    %v628 = vpop.f32.mrb[0].mxu0
    %v629 = vadd.f32 0.0, %v628
    %v630 = vpop.f32.mrb[0].mxu0
    %v631 = vpop.f32.mrb[0].mxu0
    %v632 = vpop.f32.mrb[0].mxu0
    %633 = vdwg.mxu0
    %v635 = vrot.slane %v629, 3
    %v637 = vadd.f32 %v136, %v635
    %v638 = vxor.u32 %v637, 2147483648
    %v639 = vmul.f32 %v638, 1.442695
    %v640 = vpow.pop %v639
    %v641 = vadd.f32 %v640, 1.0
    %v642 = vrcp.pop %v641
    %v643 = vmul.f32 1.0, %v642
    %v644 = vmul.f32 %v643, 2.0
    %v645 = vsub.f32 %v644, 1.0
    %v647 = vrot.slane %v573, 7
    %v649 = vmul.f32 %v643, %v647
    %651 = vrot.lane.b32.xlu0 %v645, 64
    %v652 = vpop.permute.xlu0 %651
    %v654 = vmul.f32 %v643, %v652
    %656 = vrot.lane.b32.xlu0 %v654, 32
    %v657 = vpop.permute.xlu0 %656
    %v659 = vadd.f32 %v649, %v657
    %v660 = vtanh.pop %v659
    %662 = vrot.lane.b32.xlu0 %v660, 64
    %v663 = vpop.permute.xlu0 %662
    %v665 = vmul.f32 %v643, %v663
    %667 = vrot.lane.b32.xlu0 %v665, 32
    %v668 = vpop.permute.xlu0 %667
    %vm670 = vcmask 259077
    %671 = vst.msk [vmem:[#allocation2] sm:$0x20] %vm670, %v668
    %v672 = vpack.c.bf16 %v665, %v665
    %v674 = vshrl.u32 %v672, 16
    %v676 = vrot.slane %v674, 2
    %677 = vrot.lane.b32.xlu0 %v676, 32
    %v678 = vpop.permute.xlu0 %677
    %v680 = vsel %vm159, %v678, 0
    %682 = vmatprep.subr.bf16.mxu0 0
    %683 = vmatpush1.bf16.msra.mxu0 %v155
    %684 = vmatprep.subr.bf16.mxu0 0
    %685 = vmatpush1.bf16.msra.mxu0 %v156
    %686 = vmatprep.subr.bf16.mxu0 0
    %687 = vmatpush1.bf16.msra.mxu0 0
    %688 = vmatprep.subr.bf16.mxu0 0
    %689 = vmatpush1.bf16.msra.mxu0 0
    %690 = vmatprep.subr.bf16.mxu0 0
    %691 = vmatpush1.bf16.msra.mxu0 0
    %692 = vmatprep.subr.bf16.mxu0 0
    %693 = vmatpush1.bf16.msra.mxu0 0
    %694 = vmatprep.subr.bf16.mxu0 0
    %695 = vmatpush1.bf16.msra.mxu0 0
    %696 = vmatprep.subr.bf16.mxu0 0
    %697 = vmatpush1.bf16.msra.mxu0 0
    %698 = vmatprep.subr.bf16.mxu0 0
    %699 = vmatpush1.bf16.msra.mxu0 0
    %700 = vmatprep.subr.bf16.mxu0 0
    %701 = vmatpush1.bf16.msra.mxu0 0
    %702 = vmatprep.subr.bf16.mxu0 0
    %703 = vmatpush1.bf16.msra.mxu0 0
    %704 = vmatprep.subr.bf16.mxu0 0
    %705 = vmatpush1.bf16.msra.mxu0 0
    %706 = vmatprep.subr.bf16.mxu0 0
    %707 = vmatpush1.bf16.msra.mxu0 0
    %708 = vmatprep.subr.bf16.mxu0 0
    %709 = vmatpush1.bf16.msra.mxu0 0
    %710 = vmatprep.subr.bf16.mxu0 0
    %711 = vmatpush1.bf16.msra.mxu0 0
    %712 = vmatprep.subr.bf16.mxu0 0
    %713 = vmatpush1.bf16.msra.mxu0 0
    %714 = vmatprep.mubr.bf16.mxu0 0
    %715 = vmatmul.mubr.bf16.gmra.mrb[0].mxu0 %v680
    %v716 = vpop.f32.mrb[0].mxu0
    %v717 = vadd.f32 0.0, %v716
    %v718 = vpop.f32.mrb[0].mxu0
    %v719 = vpop.f32.mrb[0].mxu0
    %v720 = vpop.f32.mrb[0].mxu0
    %721 = vdwg.mxu0
    %v723 = vrot.slane %v717, 2
    %v725 = vadd.f32 %v136, %v723
    %v726 = vxor.u32 %v725, 2147483648
    %v727 = vmul.f32 %v726, 1.442695
    %v728 = vpow.pop %v727
    %v729 = vadd.f32 %v728, 1.0
    %v730 = vrcp.pop %v729
    %v731 = vmul.f32 1.0, %v730
    %v732 = vmul.f32 %v731, 2.0
    %v733 = vsub.f32 %v732, 1.0
    %v735 = vrot.slane %v659, 7
    %v737 = vmul.f32 %v731, %v735
    %739 = vrot.lane.b32.xlu0 %v733, 64
    %v740 = vpop.permute.xlu0 %739
    %v742 = vmul.f32 %v731, %v740
    %744 = vrot.lane.b32.xlu0 %v742, 32
    %v745 = vpop.permute.xlu0 %744
    %v747 = vadd.f32 %v737, %v745
    %v748 = vtanh.pop %v747
    %750 = vrot.lane.b32.xlu0 %v748, 64
    %v751 = vpop.permute.xlu0 %750
    %v753 = vmul.f32 %v731, %v751
    %755 = vrot.lane.b32.xlu0 %v753, 32
    %v756 = vpop.permute.xlu0 %755
    %vm758 = vcmask 260102
    %759 = vst.msk [vmem:[#allocation2] sm:$0x40] %vm758, %v756
    %v760 = vpack.c.bf16 %v753, %v753
    %v762 = vrot.slane %v760, 3
    %763 = vrot.lane.b32.xlu0 %v762, 32
    %v764 = vpop.permute.xlu0 %763
    %v766 = vsel %vm159, %v764, 0
    %768 = vmatprep.subr.bf16.mxu0 0
    %769 = vmatpush1.bf16.msra.mxu0 %v155
    %770 = vmatprep.subr.bf16.mxu0 0
    %771 = vmatpush1.bf16.msra.mxu0 %v156
    %772 = vmatprep.subr.bf16.mxu0 0
    %773 = vmatpush1.bf16.msra.mxu0 0
    %774 = vmatprep.subr.bf16.mxu0 0
    %775 = vmatpush1.bf16.msra.mxu0 0
    %776 = vmatprep.subr.bf16.mxu0 0
    %777 = vmatpush1.bf16.msra.mxu0 0
    %778 = vmatprep.subr.bf16.mxu0 0
    %779 = vmatpush1.bf16.msra.mxu0 0
    %780 = vmatprep.subr.bf16.mxu0 0
    %781 = vmatpush1.bf16.msra.mxu0 0
    %782 = vmatprep.subr.bf16.mxu0 0
    %783 = vmatpush1.bf16.msra.mxu0 0
    %784 = vmatprep.subr.bf16.mxu0 0
    %785 = vmatpush1.bf16.msra.mxu0 0
    %786 = vmatprep.subr.bf16.mxu0 0
    %787 = vmatpush1.bf16.msra.mxu0 0
    %788 = vmatprep.subr.bf16.mxu0 0
    %789 = vmatpush1.bf16.msra.mxu0 0
    %790 = vmatprep.subr.bf16.mxu0 0
    %791 = vmatpush1.bf16.msra.mxu0 0
    %792 = vmatprep.subr.bf16.mxu0 0
    %793 = vmatpush1.bf16.msra.mxu0 0
    %794 = vmatprep.subr.bf16.mxu0 0
    %795 = vmatpush1.bf16.msra.mxu0 0
    %796 = vmatprep.subr.bf16.mxu0 0
    %797 = vmatpush1.bf16.msra.mxu0 0
    %798 = vmatprep.subr.bf16.mxu0 0
    %799 = vmatpush1.bf16.msra.mxu0 0
    %800 = vmatprep.mubr.bf16.mxu0 0
    %801 = vmatmul.mubr.bf16.gmra.mrb[0].mxu0 %v766
    %v802 = vpop.f32.mrb[0].mxu0
    %v803 = vadd.f32 0.0, %v802
    %v804 = vpop.f32.mrb[0].mxu0
    %v805 = vpop.f32.mrb[0].mxu0
    %v806 = vpop.f32.mrb[0].mxu0
    %807 = vdwg.mxu0
    %v809 = vrot.slane %v803, 1
    %v811 = vadd.f32 %v136, %v809
    %v812 = vxor.u32 %v811, 2147483648
    %v813 = vmul.f32 %v812, 1.442695
    %v814 = vpow.pop %v813
    %v815 = vadd.f32 %v814, 1.0
    %v816 = vrcp.pop %v815
    %v817 = vmul.f32 1.0, %v816
    %v818 = vmul.f32 %v817, 2.0
    %v819 = vsub.f32 %v818, 1.0
    %v821 = vrot.slane %v747, 7
    %v823 = vmul.f32 %v817, %v821
    %825 = vrot.lane.b32.xlu0 %v819, 64
    %v826 = vpop.permute.xlu0 %825
    %v828 = vmul.f32 %v817, %v826
    %830 = vrot.lane.b32.xlu0 %v828, 32
    %v831 = vpop.permute.xlu0 %830
    %v833 = vadd.f32 %v823, %v831
    %v834 = vtanh.pop %v833
    %836 = vrot.lane.b32.xlu0 %v834, 64
    %v837 = vpop.permute.xlu0 %836
    %v839 = vmul.f32 %v817, %v837
    %841 = vrot.lane.b32.xlu0 %v839, 32
    %v842 = vpop.permute.xlu0 %841
    %vm844 = vcmask 261127
    %845 = vst.msk [vmem:[#allocation2] sm:$0x80] %vm844, %v842
    %v846 = vld [vmem:[#allocation2] sm:$0xff]
    %v847 = vlaneseq
    %v848 = vshrl.u32 %v847, 7
    %v849 = vsub.s32 3, %v848
    %v850 = vrot.slane %v57, %v849
    %v851 = vmul.f32 %v846, %v850
    %v852 = vsel %vm159, %v851, 0.0
    %853 = vadd.xlane.f32.xlu0 %v852
    %v854 = vpop.xlane.xlu0 %853
    %v855 = vlaneseq
    %v856 = vshrl.u32 %v855, 7
    %v857 = vsub.s32 4, %v856
    %v858 = vrot.slane %v57, %v857
    %v859 = vadd.f32 %v854, %v858
    %vm860 = vcmask 7168
    %861 = vst.msk [vmem:[%s4] sm:$0xff] %vm860, %v859
    // Predicated region
    $region30: #{lstm_forward.1} parent=1 // pred_check
      _
    $region31: #{lstm_forward.1} parent=1 // pred_check_branch
      %863 = sbr.rel (0) target = $region33
    $region32: #{lstm_forward.1} parent=1 // pred_region
      _
    $region33: #{lstm_forward.1} parent=1 // pred_fallthru
      _
    // Predicated region
    $region34: #{lstm_forward.1} parent=1 // pred_check
      _
    $region35: #{lstm_forward.1} parent=1 // pred_check_branch
      %865 = sbr.rel (0) target = $region37
    $region36: #{lstm_forward.1} parent=1 // pred_region
      _
    $region37: #{lstm_forward.1} parent=1 // pred_fallthru
      _
    %866 = vsyncpa [#allocation4], 1
    %867 = vsyncpa [#allocation6], 1

</llo_original>
